<compile_context>
chip_gen: v5e
topology: v5e:2x2
jax: 0.10.0
libtpu: 0.0.40
codegen_flags: <defaults>
</compile_context>

<pallas_src>
import functools

import jax
import jax.numpy as jnp
from jax.experimental import pallas as pl
from jax.experimental.pallas import tpu as pltpu


def _round_up(x, m):
    return ((x + m - 1) // m) * m


# ---------------- Pallas kernel 1: tiled matmul + affine (+ReLU) (+residual) ------------
def _matmul_kernel(*refs, relu, has_affine, has_res):
    idx = 0
    x_ref = refs[idx]; idx += 1
    w_ref = refs[idx]; idx += 1
    if has_affine:
        s_ref = refs[idx]; idx += 1
        b_ref = refs[idx]; idx += 1
    if has_res:
        r_ref = refs[idx]; idx += 1
    o_ref = refs[idx]; idx += 1
    acc_ref = refs[idx]

    k = pl.program_id(1)

    @pl.when(k == 0)
    def _():
        acc_ref[...] = jnp.zeros_like(acc_ref)

    acc_ref[...] += jnp.dot(x_ref[...], w_ref[...],
                            preferred_element_type=jnp.float32)

    @pl.when(k == pl.num_programs(1) - 1)
    def _():
        y = acc_ref[...]
        if has_affine:
            y = y * s_ref[...] + b_ref[...]
        if relu:
            y = jnp.maximum(y, 0.0)
        if has_res:
            y = y + r_ref[...].astype(jnp.float32)
        o_ref[...] = y.astype(o_ref.dtype)


def matmul_affine(x, w, scale=None, bias=None, relu=False, residual=None,
                  tm=256, tk_max=512):
    """out = act((x @ w) * scale + bias) + residual.

    x:(M,K), w:(K,N), scale/bias:(N,) or None (skips affine), residual:(M,N) or None.
    M is tiled (parallel axis, padded/masked last tile), K is a reduction grid axis with
    a f32 VMEM accumulator; full N kept per block (lane-dense output stores).
    """
    M, K = x.shape
    Kw, N = w.shape
    assert K == Kw
    has_affine = (scale is not None) or (bias is not None)
    has_res = residual is not None

    # --- M tiling (pad to a multiple of the row tile) ---
    tm_eff = tm
    if M < tm_eff:
        tm_eff = max(8, _round_up(M, 8))
    Mp = _round_up(M, tm_eff)

    # --- K tiling (reduction axis) ---
    if K > tk_max:
        tk = tk_max
        Kp = _round_up(K, tk)
    else:
        tk = K
        Kp = K
    nk = Kp // tk

    xp = x
    if Mp > M or Kp > K:
        xp = jnp.pad(x, ((0, Mp - M), (0, Kp - K)))
    wp = w if Kp == K else jnp.pad(w, ((0, Kp - K), (0, 0)))

    in_arrays = [xp, wp]
    in_specs = [
        pl.BlockSpec((tm_eff, tk), lambda i, k: (i, k)),
        pl.BlockSpec((tk, N), lambda i, k: (k, 0)),
    ]
    if has_affine:
        s2 = (jnp.ones((N,), jnp.float32) if scale is None else scale).reshape(1, N).astype(jnp.float32)
        b2 = (jnp.zeros((N,), jnp.float32) if bias is None else bias).reshape(1, N).astype(jnp.float32)
        in_arrays += [s2, b2]
        in_specs += [pl.BlockSpec((1, N), lambda i, k: (0, 0)),
                     pl.BlockSpec((1, N), lambda i, k: (0, 0))]
    if has_res:
        r = residual if Mp == M else jnp.pad(residual, ((0, Mp - M), (0, 0)))
        in_arrays.append(r)
        in_specs.append(pl.BlockSpec((tm_eff, N), lambda i, k: (i, 0)))

    out = pl.pallas_call(
        functools.partial(_matmul_kernel, relu=relu,
                          has_affine=has_affine, has_res=has_res),
        out_shape=jax.ShapeDtypeStruct((Mp, N), jnp.float32),
        grid=(Mp // tm_eff, nk),
        in_specs=in_specs,
        out_specs=pl.BlockSpec((tm_eff, N), lambda i, k: (i, 0)),
        scratch_shapes=[pltpu.VMEM((tm_eff, N), jnp.float32)],
        compiler_params=pltpu.CompilerParams(
            dimension_semantics=("parallel", "arbitrary")),
    )(*in_arrays)
    return out[:M] if Mp > M else out


# ---------------- Pallas kernel 2: depthwise conv2d (stride 1, "same" padding) ----------
def _dwconv_kernel(x_ref, w_ref, s_ref, b_ref, o_ref, xp_ref, *, K, relu):
    H, W, C = x_ref.shape[1], x_ref.shape[2], x_ref.shape[3]
    p = (K - 1) // 2
    # Build the "same"-padded tile entirely in VMEM (no padded HBM activation).
    xp_ref[...] = jnp.zeros_like(xp_ref)
    xp_ref[p:p + H, p:p + W, :] = x_ref[0].astype(jnp.float32)

    w = w_ref[...].astype(jnp.float32)           # (K, K, C)
    acc = jnp.zeros((H, W, C), jnp.float32)
    for ki in range(K):                          # unrolled K*K taps
        for kj in range(K):
            acc = acc + xp_ref[ki:ki + H, kj:kj + W, :] * w[ki:ki + 1, kj:kj + 1, :]
    y = acc * s_ref[...] + b_ref[...]            # (1,C) broadcasts over (H,W,C)
    if relu:
        y = jnp.maximum(y, 0.0)
    o_ref[0] = y.astype(o_ref.dtype)


def depthwise_conv2d_same(x, w, scale, bias, relu=False):
    """x:(B,H,W,C) NHWC, w:(K,K,C) depthwise, stride 1, pad=(K-1)//2 ("same")."""
    B, H, W, C = x.shape
    K = w.shape[0]
    p = (K - 1) // 2
    Hp, Wp = H + 2 * p, W + 2 * p
    scale2 = scale.reshape(1, C).astype(jnp.float32)
    bias2 = bias.reshape(1, C).astype(jnp.float32)
    # TODO(synk): at real ScopeViT resolutions, tile H rows with a (K-1)-row halo instead
    #             of one full image per grid step to stay under the scoped VMEM limit.
    return pl.pallas_call(
        functools.partial(_dwconv_kernel, K=K, relu=relu),
        out_shape=jax.ShapeDtypeStruct((B, H, W, C), jnp.float32),
        grid=(B,),
        in_specs=[
            pl.BlockSpec((1, H, W, C), lambda b: (b, 0, 0, 0)),
            pl.BlockSpec((K, K, C), lambda b: (0, 0, 0)),
            pl.BlockSpec((1, C), lambda b: (0, 0)),
            pl.BlockSpec((1, C), lambda b: (0, 0)),
        ],
        out_specs=pl.BlockSpec((1, H, W, C), lambda b: (b, 0, 0, 0)),
        scratch_shapes=[pltpu.VMEM((Hp, Wp, C), jnp.float32)],
        compiler_params=pltpu.CompilerParams(dimension_semantics=("parallel",)),
    )(x, w, scale2, bias2)


# ---------------- Pallas kernel 3: multi-head attention core ----------------------------
def _attn_kernel(q_ref, kv_ref, o_ref, *, nh, hd, scale):
    q = q_ref[0].astype(jnp.float32)             # (tq, C)  heads packed along lanes
    kv = kv_ref[0].astype(jnp.float32)           # (Nk, 2C) [k | v], each head-packed
    C = nh * hd
    outs = []
    for h in range(nh):                          # static unroll; all heads in one grid step
        qh = q[:, h * hd:(h + 1) * hd]           # (tq, hd)
        kh = kv[:, h * hd:(h + 1) * hd]          # (Nk, hd)
        vh = kv[:, C + h * hd:C + (h + 1) * hd]  # (Nk, hd)
        s = jax.lax.dot_general(qh, kh, (((1,), (1,)), ((), ())),
                                preferred_element_type=jnp.float32) * scale
        m = jnp.max(s, axis=-1, keepdims=True)
        p = jnp.exp(s - m)
        denom = jnp.sum(p, axis=-1, keepdims=True)
        attn = p * pl.reciprocal(denom, approx=True)
        outs.append(jnp.dot(attn, vh, preferred_element_type=jnp.float32))
    o_ref[0] = jnp.concatenate(outs, axis=-1).astype(o_ref.dtype)


def multihead_attention(q, kv, nh, hd, scale, tq=128):
    """q:(B,N,C) head-packed, kv:(B,Nk,2C) ([key|value], each head-packed) -> (B,N,C)."""
    B, N, C = q.shape
    Nk = kv.shape[1]
    tq_eff = tq
    if N < tq_eff:
        tq_eff = max(8, _round_up(N, 8))
    Np = _round_up(N, tq_eff)
    qp = q if Np == N else jnp.pad(q, ((0, 0), (0, Np - N), (0, 0)))
    # TODO(synk): for very large N (score tile > VMEM) switch to flash-style online-softmax
    #             tiling over Nk with m/l/acc VMEM scratch.
    out = pl.pallas_call(
        functools.partial(_attn_kernel, nh=nh, hd=hd, scale=scale),
        out_shape=jax.ShapeDtypeStruct((B, Np, C), jnp.float32),
        grid=(B, Np // tq_eff),
        in_specs=[
            pl.BlockSpec((1, tq_eff, C), lambda b, i: (b, i, 0)),
            pl.BlockSpec((1, Nk, 2 * C), lambda b, i: (b, 0, 0)),
        ],
        out_specs=pl.BlockSpec((1, tq_eff, C), lambda b, i: (b, i, 0)),
        compiler_params=pltpu.CompilerParams(
            dimension_semantics=("parallel", "parallel")),
    )(qp, kv)
    return out[:, :N] if Np > N else out


# ---------------- parameters (deterministic synthetic init) -----------------------------
def init_params(key, dim, num_heads, split_heads, exp_ratio=4.0, qkv_bias=False):
    hd = dim // num_heads
    mid = int(dim * exp_ratio)
    split_ch = [s * hd for s in split_heads]     # channel split of the multi-scale embeds
    ks = [7, 5, 3]                               # large / medium / small depthwise kernels
    keys = iter(jax.random.split(key, 32))

    def nrm(shape, s=0.02):
        return jax.random.normal(next(keys), shape, jnp.float32) * s

    def bn(c):  # eval-mode BatchNorm params (gamma, beta, running mean/var)
        return dict(gamma=1.0 + nrm((c,), 0.1), beta=nrm((c,), 0.1),
                    mean=nrm((c,), 0.1), var=1.0 + jnp.abs(nrm((c,), 0.1)))

    return dict(
        dim=dim, num_heads=num_heads, dim_head=hd, split_ch=split_ch, qkv_bias=qkv_bias,
        # InvertedResidual (CPE): 1x1 expand -> 3x3 depthwise -> 1x1 project
        conv_pw_w=nrm((dim, mid)), conv_pw_b=nrm((mid,)), bn1=bn(mid),
        conv_dw_w=nrm((3, 3, mid)), conv_dw_b=nrm((mid,)), bn2=bn(mid),
        conv_pwl_w=nrm((mid, dim)), conv_pwl_b=nrm((dim,)), bn3=bn(dim),
        # multi-scale depthwise embeds (7x7 / 5x5 / 3x3)
        ms_ws=[nrm((k, k, c)) for k, c in zip(ks, split_ch)],
        ms_bs=[nrm((c,)) for c in split_ch],
        # attention projections (qkv_bias=False -> no bias on q / kv)
        q_w=nrm((dim, dim)),
        kv_w=nrm((dim, 2 * dim)),
        proj_w=nrm((dim, dim)), proj_b=nrm((dim,)),
    )


def _bn_fold(bn, conv_bias, eps=1e-5):
    s = bn['gamma'] / jnp.sqrt(bn['var'] + eps)
    b = bn['beta'] + (conv_bias - bn['mean']) * s
    return s, b


def _merged_ms_weight(ms_ws, ms_bs):
    """Embed the 5x5 / 3x3 depthwise weights into a 7x7 footprint (zero taps) so all
    three grouped depthwise 'same' convs run as ONE depthwise 7x7 over full C —
    mathematically identical, and lane-dense (no split/concat HBM round trip)."""
    Kmax = max(w.shape[0] for w in ms_ws)
    parts = []
    for w in ms_ws:
        off = (Kmax - w.shape[0]) // 2
        parts.append(jnp.pad(w, ((off, off), (off, off), (0, 0))))
    return jnp.concatenate(parts, axis=-1), jnp.concatenate(ms_bs, axis=0)


# ---------------- full MultiScaleAttention forward ---------------------------------------
def multi_scale_attention(params, x, size):
    B, N, C = x.shape
    H, W = size
    nh, hd = params['num_heads'], params['dim_head']
    scale = hd ** -0.5

    flat = x.reshape(B * N, C)                        # 'b (h w) c' flattened, NHWC pixels

    # ---- MSPE.cpe: InvertedResidual (BN folded into affine epilogues, eval mode) ----
    s1, b1 = _bn_fold(params['bn1'], params['conv_pw_b'])
    h1 = matmul_affine(flat, params['conv_pw_w'], s1, b1, relu=True)       # 1x1 + BN + ReLU
    mid = h1.shape[-1]
    h1 = h1.reshape(B, H, W, mid)
    s2, b2 = _bn_fold(params['bn2'], params['conv_dw_b'])
    h2 = depthwise_conv2d_same(h1, params['conv_dw_w'], s2, b2, relu=True)  # 3x3 dw + BN + ReLU
    s3, b3 = _bn_fold(params['bn3'], params['conv_pwl_b'])
    # 1x1 project + BN, residual skip fused into the matmul epilogue (saves an HBM pass)
    cpe_flat = matmul_affine(h2.reshape(B * N, mid), params['conv_pwl_w'],
                             s3, b3, relu=False, residual=flat)             # (B*N, C)
    cpe = cpe_flat.reshape(B, H, W, C)

    # ---- MSPE multi-scale grouped depthwise embeds (fused into one full-C dw conv) ----
    ms_w, ms_b = _merged_ms_weight(params['ms_ws'], params['ms_bs'])
    ms = depthwise_conv2d_same(cpe, ms_w, jnp.ones((C,), jnp.float32), ms_b)

    global_query = cpe_flat                           # (B*N, C)
    key_value_tok = ms.reshape(B * N, C)

    # ---- q / kv projections (qkv_bias=False -> no affine epilogue at all) ----
    q = matmul_affine(global_query, params['q_w'])                # (B*N, C)
    kv = matmul_affine(key_value_tok, params['kv_w'])             # (B*N, 2C)

    # ---- attention core: heads stay lane-packed, no wrapper transposes ----
    o = multihead_attention(q.reshape(B, N, C), kv.reshape(B, N, 2 * C),
                            nh, hd, scale)                        # (B, N, C)

    # ---- output projection ----
    out = matmul_affine(o.reshape(B * N, C), params['proj_w'],
                        jnp.ones((C,), jnp.float32), params['proj_b'])
    # attn_drop / proj_drop / DropPath have p=0.0 -> identity (inference); omitted.
    return out.reshape(B, N, C)


if __name__ == "__main__":
    key = jax.random.PRNGKey(0)
    B, H, W = 2, 8, 8
    dim, num_heads = 32, 8          # dim_head = 4
    split_heads = [4, 2, 2]         # -> channel splits [16, 8, 8]
    kp, kx = jax.random.split(key)
    params = init_params(kp, dim, num_heads, split_heads)
    x = jax.random.normal(kx, (B, H * W, dim), jnp.float32)

    out = multi_scale_attention(params, x, (H, W))
    out = jax.block_until_ready(out)
    assert out.shape == (B, H * W, dim)
    assert bool(jnp.all(jnp.isfinite(out)))
    print("KERNEL_OK")
</pallas_src>

<mosaic_0001>
module attributes {stable_mosaic.version = 11 : i64} {
  func.func @_matmul_kernel(%arg0: i32, %arg1: i32, %arg2: memref<128x32xf32, #tpu.memory_space<vmem>>, %arg3: memref<32x128xf32, #tpu.memory_space<vmem>>, %arg4: memref<1x128xf32, #tpu.memory_space<vmem>>, %arg5: memref<1x128xf32, #tpu.memory_space<vmem>>, %arg6: memref<128x128xf32, #tpu.memory_space<vmem>>, %arg7: memref<128x128xf32, #tpu.memory_space<vmem>>) attributes {dimension_semantics = [#tpu.dimension_semantics<parallel>, #tpu.dimension_semantics<arbitrary>], iteration_bounds = array<i64: 1, 1>, scalar_prefetch = 0 : i64, scratch_operands = 1 : i64, tpu.core_type = #tpu.core_type<tc>, window_params = [{transform_indices = @transform_0, window_bounds = array<i64: 128, 32>}, {transform_indices = @transform_1, window_bounds = array<i64: 32, 128>}, {pipeline_mode = #tpu.pipeline_mode<synchronous>, transform_indices = @transform_2, window_bounds = array<i64: 1, 128>}, {pipeline_mode = #tpu.pipeline_mode<synchronous>, transform_indices = @transform_3, window_bounds = array<i64: 1, 128>}, {transform_indices = @transform_4, window_bounds = array<i64: 128, 128>}]} {
    %c0_i32 = arith.constant 0 : i32
    %0 = arith.cmpi eq, %arg1, %c0_i32 : i32
    %1 = arith.extui %0 : i1 to i32
    %c0_i32_0 = arith.constant 0 : i32
    %2 = arith.cmpi ne, %1, %c0_i32_0 : i32
    scf.if %2 {
      %cst_10 = arith.constant 0.000000e+00 : f32
      %12 = vector.broadcast %cst_10 : f32 to vector<128x128xf32>
      %c0_11 = arith.constant 0 : index
      %c0_12 = arith.constant 0 : index
      %13 = vector.load %arg7[%c0_11, %c0_12] : memref<128x128xf32, #tpu.memory_space<vmem>>, vector<128x128xf32>
      tpu.vector_store %arg7[%c0_11, %c0_12], %12 {strides = array<i32>} : memref<128x128xf32, #tpu.memory_space<vmem>>, vector<128x128xf32>,
    } else {
    }
    %c0 = arith.constant 0 : index
    %c0_1 = arith.constant 0 : index
    %3 = vector.load %arg7[%c0, %c0_1] : memref<128x128xf32, #tpu.memory_space<vmem>>, vector<128x128xf32>
    %c0_2 = arith.constant 0 : index
    %c0_3 = arith.constant 0 : index
    %4 = vector.load %arg2[%c0_2, %c0_3] : memref<128x32xf32, #tpu.memory_space<vmem>>, vector<128x32xf32>
    %c0_4 = arith.constant 0 : index
    %c0_5 = arith.constant 0 : index
    %5 = vector.load %arg3[%c0_4, %c0_5] : memref<32x128xf32, #tpu.memory_space<vmem>>, vector<32x128xf32>
    %cst = arith.constant dense<0.000000e+00> : vector<128x128xf32>
    %6 = tpu.matmul %4, %5, %cst {dimension_numbers = #tpu.dot_dimension_numbers<[1], [0], [0], [1], [0, 0, 1, 1], [], []>} : vector<128x32xf32>, vector<32x128xf32>, vector<128x128xf32> -> vector<128x128xf32>
    %7 = arith.addf %3, %6 : vector<128x128xf32>
    %c0_6 = arith.constant 0 : index
    %c0_7 = arith.constant 0 : index
    %8 = vector.load %arg7[%c0_6, %c0_7] : memref<128x128xf32, #tpu.memory_space<vmem>>, vector<128x128xf32>
    tpu.vector_store %arg7[%c0_6, %c0_7], %7 {strides = array<i32>} : memref<128x128xf32, #tpu.memory_space<vmem>>, vector<128x128xf32>,
    %c0_i32_8 = arith.constant 0 : i32
    %9 = arith.cmpi eq, %arg1, %c0_i32_8 : i32
    %10 = arith.extui %9 : i1 to i32
    %c0_i32_9 = arith.constant 0 : i32
    %11 = arith.cmpi ne, %10, %c0_i32_9 : i32
    scf.if %11 {
      %c0_10 = arith.constant 0 : index
      %c0_11 = arith.constant 0 : index
      %12 = vector.load %arg7[%c0_10, %c0_11] : memref<128x128xf32, #tpu.memory_space<vmem>>, vector<128x128xf32>
      %c0_12 = arith.constant 0 : index
      %c0_13 = arith.constant 0 : index
      %13 = vector.load %arg4[%c0_12, %c0_13] : memref<1x128xf32, #tpu.memory_space<vmem>>, vector<1x128xf32>
      %14 = vector.broadcast %13 : vector<1x128xf32> to vector<128x128xf32>
      %15 = arith.mulf %12, %14 : vector<128x128xf32>
      %c0_14 = arith.constant 0 : index
      %c0_15 = arith.constant 0 : index
      %16 = vector.load %arg5[%c0_14, %c0_15] : memref<1x128xf32, #tpu.memory_space<vmem>>, vector<1x128xf32>
      %17 = vector.broadcast %16 : vector<1x128xf32> to vector<128x128xf32>
      %18 = arith.addf %15, %17 : vector<128x128xf32>
      %cst_16 = arith.constant 0.000000e+00 : f32
      %19 = vector.broadcast %cst_16 : f32 to vector<128x128xf32>
      %20 = arith.maximumf %18, %19 : vector<128x128xf32>
      %c0_17 = arith.constant 0 : index
      %c0_18 = arith.constant 0 : index
      %21 = vector.load %arg6[%c0_17, %c0_18] : memref<128x128xf32, #tpu.memory_space<vmem>>, vector<128x128xf32>
      tpu.vector_store %arg6[%c0_17, %c0_18], %20 {strides = array<i32>} : memref<128x128xf32, #tpu.memory_space<vmem>>, vector<128x128xf32>,
    } else {
    }
    return
  }
  func.func @transform_0(%arg0: i32, %arg1: i32) -> (i32, i32) {
    %c0_i32 = arith.constant 0 : i32
    return %arg0, %arg1 : i32, i32
  }
  func.func @transform_1(%arg0: i32, %arg1: i32) -> (i32, i32) {
    %c0_i32 = arith.constant 0 : i32
    %c0_i32_0 = arith.constant 0 : i32
    return %arg1, %c0_i32 : i32, i32
  }
  func.func @transform_2(%arg0: i32, %arg1: i32) -> (i32, i32) {
    %c0_i32 = arith.constant 0 : i32
    %c0_i32_0 = arith.constant 0 : i32
    %c0_i32_1 = arith.constant 0 : i32
    return %c0_i32, %c0_i32_0 : i32, i32
  }
  func.func @transform_3(%arg0: i32, %arg1: i32) -> (i32, i32) {
    %c0_i32 = arith.constant 0 : i32
    %c0_i32_0 = arith.constant 0 : i32
    %c0_i32_1 = arith.constant 0 : i32
    return %c0_i32, %c0_i32_0 : i32, i32
  }
  func.func @transform_4(%arg0: i32, %arg1: i32) -> (i32, i32) {
    %c0_i32 = arith.constant 0 : i32
    %c0_i32_0 = arith.constant 0 : i32
    return %arg0, %c0_i32 : i32, i32
  }
}

</mosaic_0001>

<llo_original>
// kernel: tpu_custom_call.1
$region0: #{tpu_custom_call.1}
  #allocation0 [shape = 'u32[]', space=smem, size = 0x4, offset = 0x4, fixed_abs, tag = 'smem constant byte address 0x4 - core index']
  #allocation1 [shape = 'u32[72,128]{1,0:T(1,128)}', space=vmem, size = 0x9000, scoped, tag = 'internal scratch']
  #allocation2 [shape = 'f32[128,128]{1,0:T(8,128)}', space=vmem, size = 0x10000, scoped, tag = 'scratch operand']
  %s0 = inlined_call_operand.vmem [shape: f32[128,32], index: 0, kind: input, shape index: {}]
  %s1 = inlined_call_operand.vmem [shape: f32[32,128], index: 1, kind: input, shape index: {}]
  %s2 = inlined_call_operand.vmem [shape: f32[1,128], index: 2, kind: input, shape index: {}]
  %s3 = inlined_call_operand.vmem [shape: f32[1,128], index: 3, kind: input, shape index: {}]
  %s4 = inlined_call_operand.hbm [shape: f32[128,128], index: 4, kind: output, shape index: {}]
  %s5 = sld [smem:[#allocation0]]
  $region34: #{tpu_custom_call.1} parent=0
    _
  %s7 = ssub.s32 1, %s5
  %s8 = scalar_select 0, %s7, %s5
  $region1: #{tpu_custom_call.1} parent=0
    #allocation3 [shape = 'u8[65536]{0}', space=vmem, size = 0x10000, scoped, tag = 'output window, operand 0, single buffered']
    #allocation4 [shape = 's32[1]{0}', space=sflag, size = 0x4, scoped, tag = 'scoped memory for tpu_custom_call.1']
    %9 = vsyncpa [#allocation4], 0
    // Predicated region
    $region2: #{tpu_custom_call.1} parent=1 // pred_check
      _
    $region3: #{tpu_custom_call.1} parent=1 // pred_check_branch
      %11 = sbr.rel (0) target = $region5
    $region4: #{tpu_custom_call.1} parent=1 // pred_region
      _
    $region5: #{tpu_custom_call.1} parent=1 // pred_fallthru
      _
    // Predicated region
    $region6: #{tpu_custom_call.1} parent=1 // pred_check
      _
    $region7: #{tpu_custom_call.1} parent=1 // pred_check_branch
      %13 = sbr.rel (0) target = $region9
    $region8: #{tpu_custom_call.1} parent=1 // pred_region
      _
    $region9: #{tpu_custom_call.1} parent=1 // pred_fallthru
      _
    // Predicated region
    $region10: #{tpu_custom_call.1} parent=1 // pred_check
      _
    $region11: #{tpu_custom_call.1} parent=1 // pred_check_branch
      %15 = sbr.rel (0) target = $region13
    $region12: #{tpu_custom_call.1} parent=1 // pred_region
      _
    $region13: #{tpu_custom_call.1} parent=1 // pred_fallthru
      _
    // Predicated region
    $region14: #{tpu_custom_call.1} parent=1 // pred_check
      _
    $region15: #{tpu_custom_call.1} parent=1 // pred_check_branch
      %17 = sbr.rel (0) target = $region17
    $region16: #{tpu_custom_call.1} parent=1 // pred_region
      _
    $region17: #{tpu_custom_call.1} parent=1 // pred_fallthru
      _
    %p18 = scmp.eq.s32.totalorder 0, 0
    // Predicated region
    $region18: #{tpu_custom_call.1} parent=1 // pred_check
      %p19 = pneg %p18
    $region19: #{tpu_custom_call.1} parent=1 // pred_check_branch
      %21 = sbr.rel (%p19) target = $region21
    $region20: #{tpu_custom_call.1} parent=1 // pred_region
      %22 = vst [vmem:[#allocation2] sm:$0xff] 0.0
      %23 = vst [vmem:[#allocation2 + $0x8] sm:$0xff] 0.0
      %24 = vst [vmem:[#allocation2 + $0x10] sm:$0xff] 0.0
      %25 = vst [vmem:[#allocation2 + $0x18] sm:$0xff] 0.0
      %26 = vst [vmem:[#allocation2 + $0x20] sm:$0xff] 0.0
      %27 = vst [vmem:[#allocation2 + $0x28] sm:$0xff] 0.0
      %28 = vst [vmem:[#allocation2 + $0x30] sm:$0xff] 0.0
      %29 = vst [vmem:[#allocation2 + $0x38] sm:$0xff] 0.0
      %30 = vst [vmem:[#allocation2 + $0x40] sm:$0xff] 0.0
      %31 = vst [vmem:[#allocation2 + $0x48] sm:$0xff] 0.0
      %32 = vst [vmem:[#allocation2 + $0x50] sm:$0xff] 0.0
      %33 = vst [vmem:[#allocation2 + $0x58] sm:$0xff] 0.0
      %34 = vst [vmem:[#allocation2 + $0x60] sm:$0xff] 0.0
      %35 = vst [vmem:[#allocation2 + $0x68] sm:$0xff] 0.0
      %36 = vst [vmem:[#allocation2 + $0x70] sm:$0xff] 0.0
      %37 = vst [vmem:[#allocation2 + $0x78] sm:$0xff] 0.0
    $region21: #{tpu_custom_call.1} parent=1 // pred_fallthru
      _
    %v38 = vld [vmem:[#allocation2] sm:$0xff]
    %v39 = vld [vmem:[#allocation2 + $0x8] sm:$0xff]
    %v40 = vld [vmem:[#allocation2 + $0x10] sm:$0xff]
    %v41 = vld [vmem:[#allocation2 + $0x18] sm:$0xff]
    %v42 = vld [vmem:[#allocation2 + $0x20] sm:$0xff]
    %v43 = vld [vmem:[#allocation2 + $0x28] sm:$0xff]
    %v44 = vld [vmem:[#allocation2 + $0x30] sm:$0xff]
    %v45 = vld [vmem:[#allocation2 + $0x38] sm:$0xff]
    %v46 = vld [vmem:[#allocation2 + $0x40] sm:$0xff]
    %v47 = vld [vmem:[#allocation2 + $0x48] sm:$0xff]
    %v48 = vld [vmem:[#allocation2 + $0x50] sm:$0xff]
    %v49 = vld [vmem:[#allocation2 + $0x58] sm:$0xff]
    %v50 = vld [vmem:[#allocation2 + $0x60] sm:$0xff]
    %v51 = vld [vmem:[#allocation2 + $0x68] sm:$0xff]
    %v52 = vld [vmem:[#allocation2 + $0x70] sm:$0xff]
    %v53 = vld [vmem:[#allocation2 + $0x78] sm:$0xff]
    %v54 = vld [vmem:[%s0] sm:$0xff]
    %v55 = vld [vmem:[%s0 + $0x8] sm:$0xff]
    %v56 = vld [vmem:[%s0 + $0x10] sm:$0xff]
    %v57 = vld [vmem:[%s0 + $0x18] sm:$0xff]
    %v58 = vld [vmem:[%s0 + $0x20] sm:$0xff]
    %v59 = vld [vmem:[%s0 + $0x28] sm:$0xff]
    %v60 = vld [vmem:[%s0 + $0x30] sm:$0xff]
    %v61 = vld [vmem:[%s0 + $0x38] sm:$0xff]
    %v62 = vld [vmem:[%s0 + $0x40] sm:$0xff]
    %v63 = vld [vmem:[%s0 + $0x48] sm:$0xff]
    %v64 = vld [vmem:[%s0 + $0x50] sm:$0xff]
    %v65 = vld [vmem:[%s0 + $0x58] sm:$0xff]
    %v66 = vld [vmem:[%s0 + $0x60] sm:$0xff]
    %v67 = vld [vmem:[%s0 + $0x68] sm:$0xff]
    %v68 = vld [vmem:[%s0 + $0x70] sm:$0xff]
    %v69 = vld [vmem:[%s0 + $0x78] sm:$0xff]
    %v70 = vld [vmem:[%s1] sm:$0xff]
    %v71 = vld [vmem:[%s1 + $0x8] sm:$0xff]
    %v72 = vld [vmem:[%s1 + $0x10] sm:$0xff]
    %v73 = vld [vmem:[%s1 + $0x18] sm:$0xff]
    %vm74 = vcmask 261120
    %v76 = vsel %vm74, %v54, 0
    %v79 = vsel %vm74, %v55, 0
    %v82 = vsel %vm74, %v56, 0
    %v85 = vsel %vm74, %v57, 0
    %v88 = vsel %vm74, %v58, 0
    %v91 = vsel %vm74, %v59, 0
    %v94 = vsel %vm74, %v60, 0
    %v97 = vsel %vm74, %v61, 0
    %v100 = vsel %vm74, %v62, 0
    %v103 = vsel %vm74, %v63, 0
    %v106 = vsel %vm74, %v64, 0
    %v109 = vsel %vm74, %v65, 0
    %v112 = vsel %vm74, %v66, 0
    %v115 = vsel %vm74, %v67, 0
    %v118 = vsel %vm74, %v68, 0
    %v121 = vsel %vm74, %v69, 0
    %123 = vmatpush.msra.mxu0 0.0
    %124 = vmatpush.msra.mxu0 0.0
    %125 = vmatpush.msra.mxu0 0.0
    %126 = vmatpush.msra.mxu0 0.0
    %127 = vmatpush.msra.mxu0 0.0
    %128 = vmatpush.msra.mxu0 0.0
    %129 = vmatpush.msra.mxu0 0.0
    %130 = vmatpush.msra.mxu0 0.0
    %131 = vmatpush.msra.mxu0 0.0
    %132 = vmatpush.msra.mxu0 0.0
    %133 = vmatpush.msra.mxu0 0.0
    %134 = vmatpush.msra.mxu0 0.0
    %135 = vmatpush.msra.mxu0 %v73
    %136 = vmatpush.msra.mxu0 %v72
    %137 = vmatpush.msra.mxu0 %v71
    %138 = vmatpush.msra.mxu0 %v70
    %139 = vmatmul.f32.gmra.mxu0 %v76
    %v140 = vpop.f32.mrf.mxu0
    %v141 = vadd.f32 0.0, %v140
    %142 = vmatmul.f32.gmra.mxu0 %v79
    %v143 = vpop.f32.mrf.mxu0
    %v144 = vadd.f32 0.0, %v143
    %145 = vmatmul.f32.gmra.mxu0 %v82
    %v146 = vpop.f32.mrf.mxu0
    %v147 = vadd.f32 0.0, %v146
    %148 = vmatmul.f32.gmra.mxu0 %v85
    %v149 = vpop.f32.mrf.mxu0
    %v150 = vadd.f32 0.0, %v149
    %151 = vmatmul.f32.gmra.mxu0 %v88
    %v152 = vpop.f32.mrf.mxu0
    %v153 = vadd.f32 0.0, %v152
    %154 = vmatmul.f32.gmra.mxu0 %v91
    %v155 = vpop.f32.mrf.mxu0
    %v156 = vadd.f32 0.0, %v155
    %157 = vmatmul.f32.gmra.mxu0 %v94
    %v158 = vpop.f32.mrf.mxu0
    %v159 = vadd.f32 0.0, %v158
    %160 = vmatmul.f32.gmra.mxu0 %v97
    %v161 = vpop.f32.mrf.mxu0
    %v162 = vadd.f32 0.0, %v161
    %163 = vmatmul.f32.gmra.mxu0 %v100
    %v164 = vpop.f32.mrf.mxu0
    %v165 = vadd.f32 0.0, %v164
    %166 = vmatmul.f32.gmra.mxu0 %v103
    %v167 = vpop.f32.mrf.mxu0
    %v168 = vadd.f32 0.0, %v167
    %169 = vmatmul.f32.gmra.mxu0 %v106
    %v170 = vpop.f32.mrf.mxu0
    %v171 = vadd.f32 0.0, %v170
    %172 = vmatmul.f32.gmra.mxu0 %v109
    %v173 = vpop.f32.mrf.mxu0
    %v174 = vadd.f32 0.0, %v173
    %175 = vmatmul.f32.gmra.mxu0 %v112
    %v176 = vpop.f32.mrf.mxu0
    %v177 = vadd.f32 0.0, %v176
    %178 = vmatmul.f32.gmra.mxu0 %v115
    %v179 = vpop.f32.mrf.mxu0
    %v180 = vadd.f32 0.0, %v179
    %181 = vmatmul.f32.gmra.mxu0 %v118
    %v182 = vpop.f32.mrf.mxu0
    %v183 = vadd.f32 0.0, %v182
    %184 = vmatmul.f32.gmra.mxu0 %v121
    %v185 = vpop.f32.mrf.mxu0
    %v186 = vadd.f32 0.0, %v185
    %187 = vdwg.mxu0
    %v188 = vadd.f32 %v38, %v141
    %v189 = vadd.f32 %v39, %v144
    %v190 = vadd.f32 %v40, %v147
    %v191 = vadd.f32 %v41, %v150
    %v192 = vadd.f32 %v42, %v153
    %v193 = vadd.f32 %v43, %v156
    %v194 = vadd.f32 %v44, %v159
    %v195 = vadd.f32 %v45, %v162
    %v196 = vadd.f32 %v46, %v165
    %v197 = vadd.f32 %v47, %v168
    %v198 = vadd.f32 %v48, %v171
    %v199 = vadd.f32 %v49, %v174
    %v200 = vadd.f32 %v50, %v177
    %v201 = vadd.f32 %v51, %v180
    %v202 = vadd.f32 %v52, %v183
    %v203 = vadd.f32 %v53, %v186
    %204 = vst [vmem:[#allocation2] sm:$0xff] %v188
    %205 = vst [vmem:[#allocation2 + $0x8] sm:$0xff] %v189
    %206 = vst [vmem:[#allocation2 + $0x10] sm:$0xff] %v190
    %207 = vst [vmem:[#allocation2 + $0x18] sm:$0xff] %v191
    %208 = vst [vmem:[#allocation2 + $0x20] sm:$0xff] %v192
    %209 = vst [vmem:[#allocation2 + $0x28] sm:$0xff] %v193
    %210 = vst [vmem:[#allocation2 + $0x30] sm:$0xff] %v194
    %211 = vst [vmem:[#allocation2 + $0x38] sm:$0xff] %v195
    %212 = vst [vmem:[#allocation2 + $0x40] sm:$0xff] %v196
    %213 = vst [vmem:[#allocation2 + $0x48] sm:$0xff] %v197
    %214 = vst [vmem:[#allocation2 + $0x50] sm:$0xff] %v198
    %215 = vst [vmem:[#allocation2 + $0x58] sm:$0xff] %v199
    %216 = vst [vmem:[#allocation2 + $0x60] sm:$0xff] %v200
    %217 = vst [vmem:[#allocation2 + $0x68] sm:$0xff] %v201
    %218 = vst [vmem:[#allocation2 + $0x70] sm:$0xff] %v202
    %219 = vst [vmem:[#allocation2 + $0x78] sm:$0xff] %v203
    // Predicated region
    $region22: #{tpu_custom_call.1} parent=1 // pred_check
      %p220 = pneg %p18
    $region23: #{tpu_custom_call.1} parent=1 // pred_check_branch
      %222 = sbr.rel (%p220) target = $region25
    $region24: #{tpu_custom_call.1} parent=1 // pred_region
      %v223 = vld [vmem:[#allocation2] sm:$0xff]
      %v224 = vld [vmem:[#allocation2 + $0x8] sm:$0xff]
      %v225 = vld [vmem:[#allocation2 + $0x10] sm:$0xff]
      %v226 = vld [vmem:[#allocation2 + $0x18] sm:$0xff]
      %v227 = vld [vmem:[#allocation2 + $0x20] sm:$0xff]
      %v228 = vld [vmem:[#allocation2 + $0x28] sm:$0xff]
      %v229 = vld [vmem:[#allocation2 + $0x30] sm:$0xff]
      %v230 = vld [vmem:[#allocation2 + $0x38] sm:$0xff]
      %v231 = vld [vmem:[#allocation2 + $0x40] sm:$0xff]
      %v232 = vld [vmem:[#allocation2 + $0x48] sm:$0xff]
      %v233 = vld [vmem:[#allocation2 + $0x50] sm:$0xff]
      %v234 = vld [vmem:[#allocation2 + $0x58] sm:$0xff]
      %v235 = vld [vmem:[#allocation2 + $0x60] sm:$0xff]
      %v236 = vld [vmem:[#allocation2 + $0x68] sm:$0xff]
      %v237 = vld [vmem:[#allocation2 + $0x70] sm:$0xff]
      %v238 = vld [vmem:[#allocation2 + $0x78] sm:$0xff]
      %v239 = vld [vmem:[%s2] sm:$0x1]
      %v241 = vperm.slane %v239, 0
      %v243 = vmul.f32 %v223, %v241
      %v244 = vmul.f32 %v224, %v241
      %v245 = vmul.f32 %v225, %v241
      %v246 = vmul.f32 %v226, %v241
      %v247 = vmul.f32 %v227, %v241
      %v248 = vmul.f32 %v228, %v241
      %v249 = vmul.f32 %v229, %v241
      %v250 = vmul.f32 %v230, %v241
      %v251 = vmul.f32 %v231, %v241
      %v252 = vmul.f32 %v232, %v241
      %v253 = vmul.f32 %v233, %v241
      %v254 = vmul.f32 %v234, %v241
      %v255 = vmul.f32 %v235, %v241
      %v256 = vmul.f32 %v236, %v241
      %v257 = vmul.f32 %v237, %v241
      %v258 = vmul.f32 %v238, %v241
      %v259 = vld [vmem:[%s3] sm:$0x1]
      %v261 = vperm.slane %v259, 0
      %v263 = vadd.f32 %v243, %v261
      %v264 = vadd.f32 %v244, %v261
      %v265 = vadd.f32 %v245, %v261
      %v266 = vadd.f32 %v246, %v261
      %v267 = vadd.f32 %v247, %v261
      %v268 = vadd.f32 %v248, %v261
      %v269 = vadd.f32 %v249, %v261
      %v270 = vadd.f32 %v250, %v261
      %v271 = vadd.f32 %v251, %v261
      %v272 = vadd.f32 %v252, %v261
      %v273 = vadd.f32 %v253, %v261
      %v274 = vadd.f32 %v254, %v261
      %v275 = vadd.f32 %v255, %v261
      %v276 = vadd.f32 %v256, %v261
      %v277 = vadd.f32 %v257, %v261
      %v278 = vadd.f32 %v258, %v261
      %v279 = vmax.f32 %v263, 0.0
      %v280 = vmax.f32 %v264, 0.0
      %v281 = vmax.f32 %v265, 0.0
      %v282 = vmax.f32 %v266, 0.0
      %v283 = vmax.f32 %v267, 0.0
      %v284 = vmax.f32 %v268, 0.0
      %v285 = vmax.f32 %v269, 0.0
      %v286 = vmax.f32 %v270, 0.0
      %v287 = vmax.f32 %v271, 0.0
      %v288 = vmax.f32 %v272, 0.0
      %v289 = vmax.f32 %v273, 0.0
      %v290 = vmax.f32 %v274, 0.0
      %v291 = vmax.f32 %v275, 0.0
      %v292 = vmax.f32 %v276, 0.0
      %v293 = vmax.f32 %v277, 0.0
      %v294 = vmax.f32 %v278, 0.0
      %295 = vst [vmem:[#allocation3] sm:$0xff] %v279
      %296 = vst [vmem:[#allocation3 + $0x8] sm:$0xff] %v280
      %297 = vst [vmem:[#allocation3 + $0x10] sm:$0xff] %v281
      %298 = vst [vmem:[#allocation3 + $0x18] sm:$0xff] %v282
      %299 = vst [vmem:[#allocation3 + $0x20] sm:$0xff] %v283
      %300 = vst [vmem:[#allocation3 + $0x28] sm:$0xff] %v284
      %301 = vst [vmem:[#allocation3 + $0x30] sm:$0xff] %v285
      %302 = vst [vmem:[#allocation3 + $0x38] sm:$0xff] %v286
      %303 = vst [vmem:[#allocation3 + $0x40] sm:$0xff] %v287
      %304 = vst [vmem:[#allocation3 + $0x48] sm:$0xff] %v288
      %305 = vst [vmem:[#allocation3 + $0x50] sm:$0xff] %v289
      %306 = vst [vmem:[#allocation3 + $0x58] sm:$0xff] %v290
      %307 = vst [vmem:[#allocation3 + $0x60] sm:$0xff] %v291
      %308 = vst [vmem:[#allocation3 + $0x68] sm:$0xff] %v292
      %309 = vst [vmem:[#allocation3 + $0x70] sm:$0xff] %v293
      %310 = vst [vmem:[#allocation3 + $0x78] sm:$0xff] %v294
    $region25: #{tpu_custom_call.1} parent=1 // pred_fallthru
      _
    // Predicated region
    $region26: #{tpu_custom_call.1} parent=1 // pred_check
      _
    $region27: #{tpu_custom_call.1} parent=1 // pred_check_branch
      %312 = sbr.rel (0) target = $region29
    $region28: #{tpu_custom_call.1} parent=1 // pred_region
      %314 = vsyncadd [#allocation4], 0
      %s315 = sshll.u32 [#allocation3], 4
      %s316 = int_to_ptr.vmem [resolvable:$true] %s315
      %s317 = sshll.u32 %s4, 4
      %s318 = int_to_ptr.hbm [resolvable:$true] %s317
      %323 = dma.vmem_to_hbm [thread:$0]  %s316, 2048, %s318, [#allocation4], 128, 128, 8
    $region29: #{tpu_custom_call.1} parent=1 // pred_fallthru
      _
    // Predicated region
    $region30: #{tpu_custom_call.1} parent=1 // pred_check
      _
    $region31: #{tpu_custom_call.1} parent=1 // pred_check_branch
      %325 = sbr.rel (0) target = $region33
    $region32: #{tpu_custom_call.1} parent=1 // pred_region
      %327 = dma.done [#allocation4], 2048
    $region33: #{tpu_custom_call.1} parent=1 // pred_fallthru
      _
    %328 = vsyncpa [#allocation4], 1

</llo_original>
